<compile_context>
chip_gen: v7x
topology: tpu7x:2x2x1
jax: 0.10.0
libtpu: 0.0.40
codegen_flags: <defaults>
</compile_context>

<pallas_src>
import jax
import jax.numpy as jnp
from jax.experimental import pallas as pl
from jax.experimental.pallas import tpu as pltpu


def _vse_kernel(v_ref, q_ref, w1_ref, b1_ref, w2_ref, b2_ref, out_ref):
    # ---- visual branch: global pool over H*W + L2 normalize over C ----------
    # sum (not mean): the /HW scale is a no-op under L2 normalization.
    v = v_ref[...].astype(jnp.float32)                    # (TN, HW, C)
    v_pool = jnp.sum(v, axis=1)                           # (TN, C)
    v_inv = jax.lax.rsqrt(
        jnp.maximum(jnp.sum(v_pool * v_pool, axis=1, keepdims=True), 1e-24))
    v_n = v_pool * v_inv                                  # == F.normalize(avg_pool(v))

    # ---- text branch: bag-of-words + L2 normalize ----------------------------
    # sum (not sum/len): the /q_len scale is also a no-op under L2 normalization.
    q = q_ref[...].astype(jnp.float32)                    # (TN, S, E)
    q_bow = jnp.sum(q, axis=1)                            # (TN, E)
    q_inv = jax.lax.rsqrt(
        jnp.maximum(jnp.sum(q_bow * q_bow, axis=1, keepdims=True), 1e-24))
    q_n = q_bow * q_inv                                   # == F.normalize(BoW(q))

    # ---- GroupMLP -------------------------------------------------------------
    # conv1 (1x1 Conv1d) == dense on concat([v, q]); single fused K=(C+E) matmul.
    x = jnp.concatenate([v_n, q_n], axis=1).astype(jnp.bfloat16)   # (TN, C+E)
    h = jnp.dot(x, w1_ref[...], preferred_element_type=jnp.float32) + b1_ref[...]
    h = jnp.maximum(h, 0.0)                               # ReLU
    # TODO(synk): Dropout(p=0.5) is identity in eval mode; not applied here.

    # conv2 (grouped 1x1 Conv1d) == dense against a block-diagonal weight
    # (materialized once in the wrapper) -> one lane-dense MXU pass.
    out = jnp.dot(h.astype(jnp.bfloat16), w2_ref[...],
                  preferred_element_type=jnp.float32) + b2_ref[...]
    out_ref[...] = out.astype(out_ref.dtype)


def vse_forward(v, q_emb, w1, b1, w2_groups, b2, *, block_n=128):
    """VisualSemanticEmbedding forward.

    v:         (N, C, H, W) float  - visual features (NCHW, PyTorch convention)
    q_emb:     (N, S, E)    float  - gathered word embeddings (padding rows are 0)
    w1:        (C+E, MID)          - conv1 weight (dense; vision rows first)
    b1:        (MID,)
    w2_groups: (G, MID//G, OUT//G) - grouped conv2 weight
    b2:        (OUT,)
    """
    N, C, H, W = v.shape
    S, E = q_emb.shape[1], q_emb.shape[2]
    HW = H * W
    MID = w1.shape[1]
    G, mpg, opg = w2_groups.shape
    OUT = G * opg

    # NHWC-style layout: C on lanes (lane-dense DMA + MXU-friendly pooled layout).
    v_nhwc = jnp.transpose(v, (0, 2, 3, 1)).reshape(N, HW, C).astype(jnp.bfloat16)
    q_bf16 = q_emb.astype(jnp.bfloat16)

    # Block-diagonal rewrite of the grouped conv (built once, ~MID*OUT*2B of VMEM).
    w2_bd = jax.scipy.linalg.block_diag(*w2_groups).astype(jnp.bfloat16)  # (MID, OUT)
    w1_bf16 = w1.astype(jnp.bfloat16)
    b1_2d = b1.reshape(1, MID).astype(jnp.float32)
    b2_2d = b2.reshape(1, OUT).astype(jnp.float32)

    block_n = min(block_n, N)
    grid = (pl.cdiv(N, block_n),)

    return pl.pallas_call(
        _vse_kernel,
        out_shape=jax.ShapeDtypeStruct((N, OUT), jnp.float32),
        grid=grid,
        in_specs=[
            # batch-tiled activations (auto double-buffered by Pallas)
            pl.BlockSpec((block_n, HW, C), lambda i: (i, 0, 0)),
            pl.BlockSpec((block_n, S, E), lambda i: (i, 0, 0)),
            # weights/biases: constant block index -> fetched once, VMEM-resident
            pl.BlockSpec((C + E, MID), lambda i: (0, 0)),
            pl.BlockSpec((1, MID), lambda i: (0, 0)),
            pl.BlockSpec((MID, OUT), lambda i: (0, 0)),
            pl.BlockSpec((1, OUT), lambda i: (0, 0)),
        ],
        out_specs=pl.BlockSpec((block_n, OUT), lambda i: (i, 0)),
        compiler_params=pltpu.CompilerParams(
            dimension_semantics=("parallel",),   # megacore sharding on v7x
        ),
    )(v_nhwc, q_bf16, w1_bf16, b1_2d, w2_bd, b2_2d)


def _reference(v, q_tokens, q_len, emb_table, w1, b1, w2_groups, b2):
    """Pure-JAX f32 reference matching the PyTorch module (eval mode)."""
    N, C, H, W = v.shape
    v_pool = jnp.mean(v, axis=(2, 3))
    v_n = v_pool / jnp.maximum(
        jnp.sqrt(jnp.sum(v_pool * v_pool, axis=1, keepdims=True)), 1e-12)
    q_emb = jnp.take(emb_table, q_tokens, axis=0)
    q_bow = jnp.sum(q_emb, axis=1) / q_len[:, None].astype(jnp.float32)
    q_n = q_bow / jnp.maximum(
        jnp.sqrt(jnp.sum(q_bow * q_bow, axis=1, keepdims=True)), 1e-12)
    x = jnp.concatenate([v_n, q_n], axis=1)
    h = jnp.maximum(x @ w1 + b1[None, :], 0.0)
    G, mpg, opg = w2_groups.shape
    hg = h.reshape(N, G, mpg)
    out = jnp.einsum('ngc,gco->ngo', hg, w2_groups).reshape(N, G * opg) + b2[None, :]
    return out


if __name__ == "__main__":
    # Small, module-consistent shapes (scaled-down features / mid / groups).
    N, C, H, W = 16, 64, 4, 4       # batch, vision channels, spatial
    S, E = 8, 32                    # max question length, question (embedding) features
    VOCAB = 50                      # embedding_tokens
    MID, OUT, GROUPS = 256, 128, 8  # GroupMLP mid/out features, groups
    D = C + E
    BLOCK_N = 8                     # batch tile (multiple of 8); 2 grid steps here

    key = jax.random.PRNGKey(0)
    k = jax.random.split(key, 6)

    # inputs
    v = jax.random.normal(k[0], (N, C, H, W), jnp.float32)
    q_len = jax.random.randint(k[5], (N,), 3, S + 1)                 # 3..S
    q_tokens = jax.random.randint(k[1], (N, S), 1, VOCAB)
    pos = jnp.arange(S)[None, :]
    q_tokens = jnp.where(pos < q_len[:, None], q_tokens, 0)          # pad with idx 0

    # parameters (deterministic, synthetic)
    emb_table = jax.random.normal(k[2], (VOCAB, E), jnp.float32)
    emb_table = emb_table.at[0].set(0.0)                             # padding_idx=0

    def xavier(key_, shape, fan_in, fan_out):
        bound = (6.0 / (fan_in + fan_out)) ** 0.5
        return jax.random.uniform(key_, shape, jnp.float32, -bound, bound)

    w1 = xavier(k[3], (D, MID), D, MID)                   # conv1: 1x1 conv == dense
    b1 = jnp.zeros((MID,), jnp.float32)
    mpg, opg = MID // GROUPS, OUT // GROUPS
    w2 = xavier(k[4], (GROUPS, mpg, opg), mpg, OUT)       # grouped conv weights
    b2 = jnp.zeros((OUT,), jnp.float32)

    # embedding lookup (gather) stays in JAX glue
    q_emb = jnp.take(emb_table, q_tokens, axis=0)         # (N, S, E)

    out = vse_forward(v, q_emb, w1, b1, w2, b2, block_n=BLOCK_N)
    out = jax.block_until_ready(out)
    assert out.shape == (N, OUT) and out.dtype == jnp.float32

    # loose check vs f32 reference (kernel uses bf16 transfers/MXU operands)
    ref = _reference(v, q_tokens, q_len, emb_table, w1, b1, w2, b2)
    max_err = float(jnp.max(jnp.abs(out - ref)))
    assert max_err < 3e-2, f"max abs error {max_err}"

    print("KERNEL_OK")
</pallas_src>

<mosaic_0001>
module attributes {stable_mosaic.version = 11 : i64} {
  func.func @_vse_kernel(%arg0: i32, %arg1: memref<8x16x64xbf16, #tpu.memory_space<vmem>>, %arg2: memref<8x8x32xbf16, #tpu.memory_space<vmem>>, %arg3: memref<96x256xbf16, #tpu.memory_space<vmem>>, %arg4: memref<1x256xf32, #tpu.memory_space<vmem>>, %arg5: memref<256x128xbf16, #tpu.memory_space<vmem>>, %arg6: memref<1x128xf32, #tpu.memory_space<vmem>>, %arg7: memref<8x128xf32, #tpu.memory_space<vmem>>) attributes {dimension_semantics = [#tpu.dimension_semantics<parallel>], iteration_bounds = array<i64: 2>, scalar_prefetch = 0 : i64, scratch_operands = 0 : i64, tpu.core_type = #tpu.core_type<tc>, window_params = [{transform_indices = @transform_0, window_bounds = array<i64: 8, 16, 64>}, {transform_indices = @transform_1, window_bounds = array<i64: 8, 8, 32>}, {pipeline_mode = #tpu.pipeline_mode<synchronous>, transform_indices = @transform_2, window_bounds = array<i64: 96, 256>}, {pipeline_mode = #tpu.pipeline_mode<synchronous>, transform_indices = @transform_3, window_bounds = array<i64: 1, 256>}, {pipeline_mode = #tpu.pipeline_mode<synchronous>, transform_indices = @transform_4, window_bounds = array<i64: 256, 128>}, {pipeline_mode = #tpu.pipeline_mode<synchronous>, transform_indices = @transform_5, window_bounds = array<i64: 1, 128>}, {transform_indices = @transform_6, window_bounds = array<i64: 8, 128>}]} {
    %c0 = arith.constant 0 : index
    %c0_0 = arith.constant 0 : index
    %c0_1 = arith.constant 0 : index
    %0 = vector.load %arg1[%c0, %c0_0, %c0_1] : memref<8x16x64xbf16, #tpu.memory_space<vmem>>, vector<8x16x64xbf16>
    %1 = arith.extf %0 : vector<8x16x64xbf16> to vector<8x16x64xf32>
    %cst = arith.constant dense<0.000000e+00> : vector<8x64xf32>
    %2 = vector.multi_reduction <add>, %1, %cst [1] : vector<8x16x64xf32> to vector<8x64xf32>
    %3 = arith.mulf %2, %2 : vector<8x64xf32>
    %cst_2 = arith.constant dense<0.000000e+00> : vector<8xf32>
    %4 = vector.multi_reduction <add>, %3, %cst_2 [1] : vector<8x64xf32> to vector<8xf32>
    %5 = vector.shape_cast %4 : vector<8xf32> to vector<8x1xf32>
    %cst_3 = arith.constant 1.000000e-24 : f32
    %6 = vector.broadcast %cst_3 : f32 to vector<8x1xf32>
    %7 = arith.maximumf %5, %6 : vector<8x1xf32>
    %8 = math.rsqrt %7 : vector<8x1xf32>
    %9 = vector.broadcast %8 : vector<8x1xf32> to vector<8x64xf32>
    %10 = arith.mulf %2, %9 : vector<8x64xf32>
    %c0_4 = arith.constant 0 : index
    %c0_5 = arith.constant 0 : index
    %c0_6 = arith.constant 0 : index
    %11 = vector.load %arg2[%c0_4, %c0_5, %c0_6] : memref<8x8x32xbf16, #tpu.memory_space<vmem>>, vector<8x8x32xbf16>
    %12 = arith.extf %11 : vector<8x8x32xbf16> to vector<8x8x32xf32>
    %cst_7 = arith.constant dense<0.000000e+00> : vector<8x32xf32>
    %13 = vector.multi_reduction <add>, %12, %cst_7 [1] : vector<8x8x32xf32> to vector<8x32xf32>
    %14 = arith.mulf %13, %13 : vector<8x32xf32>
    %cst_8 = arith.constant dense<0.000000e+00> : vector<8xf32>
    %15 = vector.multi_reduction <add>, %14, %cst_8 [1] : vector<8x32xf32> to vector<8xf32>
    %16 = vector.shape_cast %15 : vector<8xf32> to vector<8x1xf32>
    %cst_9 = arith.constant 1.000000e-24 : f32
    %17 = vector.broadcast %cst_9 : f32 to vector<8x1xf32>
    %18 = arith.maximumf %16, %17 : vector<8x1xf32>
    %19 = math.rsqrt %18 : vector<8x1xf32>
    %20 = vector.broadcast %19 : vector<8x1xf32> to vector<8x32xf32>
    %21 = arith.mulf %13, %20 : vector<8x32xf32>
    %22 = tpu.concatenate %10, %21 in 1 : vector<8x64xf32>, vector<8x32xf32> -> vector<8x96xf32>
    %23 = arith.truncf %22 : vector<8x96xf32> to vector<8x96xbf16>
    %c0_10 = arith.constant 0 : index
    %c0_11 = arith.constant 0 : index
    %24 = vector.load %arg3[%c0_10, %c0_11] : memref<96x256xbf16, #tpu.memory_space<vmem>>, vector<96x256xbf16>
    %cst_12 = arith.constant dense<0.000000e+00> : vector<8x256xf32>
    %25 = tpu.matmul %23, %24, %cst_12 {dimension_numbers = #tpu.dot_dimension_numbers<[1], [0], [0], [1], [0, 0, 1, 1], [], []>} : vector<8x96xbf16>, vector<96x256xbf16>, vector<8x256xf32> -> vector<8x256xf32>
    %c0_13 = arith.constant 0 : index
    %c0_14 = arith.constant 0 : index
    %26 = vector.load %arg4[%c0_13, %c0_14] : memref<1x256xf32, #tpu.memory_space<vmem>>, vector<1x256xf32>
    %27 = vector.broadcast %26 : vector<1x256xf32> to vector<8x256xf32>
    %28 = arith.addf %25, %27 : vector<8x256xf32>
    %cst_15 = arith.constant 0.000000e+00 : f32
    %29 = vector.broadcast %cst_15 : f32 to vector<8x256xf32>
    %30 = arith.maximumf %28, %29 : vector<8x256xf32>
    %31 = arith.truncf %30 : vector<8x256xf32> to vector<8x256xbf16>
    %c0_16 = arith.constant 0 : index
    %c0_17 = arith.constant 0 : index
    %32 = vector.load %arg5[%c0_16, %c0_17] : memref<256x128xbf16, #tpu.memory_space<vmem>>, vector<256x128xbf16>
    %cst_18 = arith.constant dense<0.000000e+00> : vector<8x128xf32>
    %33 = tpu.matmul %31, %32, %cst_18 {dimension_numbers = #tpu.dot_dimension_numbers<[1], [0], [0], [1], [0, 0, 1, 1], [], []>} : vector<8x256xbf16>, vector<256x128xbf16>, vector<8x128xf32> -> vector<8x128xf32>
    %c0_19 = arith.constant 0 : index
    %c0_20 = arith.constant 0 : index
    %34 = vector.load %arg6[%c0_19, %c0_20] : memref<1x128xf32, #tpu.memory_space<vmem>>, vector<1x128xf32>
    %35 = vector.broadcast %34 : vector<1x128xf32> to vector<8x128xf32>
    %36 = arith.addf %33, %35 : vector<8x128xf32>
    %c0_21 = arith.constant 0 : index
    %c0_22 = arith.constant 0 : index
    %37 = vector.load %arg7[%c0_21, %c0_22] : memref<8x128xf32, #tpu.memory_space<vmem>>, vector<8x128xf32>
    tpu.vector_store %arg7[%c0_21, %c0_22], %36 {strides = array<i32>} : memref<8x128xf32, #tpu.memory_space<vmem>>, vector<8x128xf32>,
    return
  }
  func.func @transform_0(%arg0: i32) -> (i32, i32, i32) {
    %c0_i32 = arith.constant 0 : i32
    %c0_i32_0 = arith.constant 0 : i32
    %c0_i32_1 = arith.constant 0 : i32
    return %arg0, %c0_i32, %c0_i32_0 : i32, i32, i32
  }
  func.func @transform_1(%arg0: i32) -> (i32, i32, i32) {
    %c0_i32 = arith.constant 0 : i32
    %c0_i32_0 = arith.constant 0 : i32
    %c0_i32_1 = arith.constant 0 : i32
    return %arg0, %c0_i32, %c0_i32_0 : i32, i32, i32
  }
  func.func @transform_2(%arg0: i32) -> (i32, i32) {
    %c0_i32 = arith.constant 0 : i32
    %c0_i32_0 = arith.constant 0 : i32
    %c0_i32_1 = arith.constant 0 : i32
    return %c0_i32, %c0_i32_0 : i32, i32
  }
  func.func @transform_3(%arg0: i32) -> (i32, i32) {
    %c0_i32 = arith.constant 0 : i32
    %c0_i32_0 = arith.constant 0 : i32
    %c0_i32_1 = arith.constant 0 : i32
    return %c0_i32, %c0_i32_0 : i32, i32
  }
  func.func @transform_4(%arg0: i32) -> (i32, i32) {
    %c0_i32 = arith.constant 0 : i32
    %c0_i32_0 = arith.constant 0 : i32
    %c0_i32_1 = arith.constant 0 : i32
    return %c0_i32, %c0_i32_0 : i32, i32
  }
  func.func @transform_5(%arg0: i32) -> (i32, i32) {
    %c0_i32 = arith.constant 0 : i32
    %c0_i32_0 = arith.constant 0 : i32
    %c0_i32_1 = arith.constant 0 : i32
    return %c0_i32, %c0_i32_0 : i32, i32
  }
  func.func @transform_6(%arg0: i32) -> (i32, i32) {
    %c0_i32 = arith.constant 0 : i32
    %c0_i32_0 = arith.constant 0 : i32
    return %arg0, %c0_i32 : i32, i32
  }
}

</mosaic_0001>

<llo_original>
// kernel: tpu_custom_call.1
$region0: #{tpu_custom_call.1}
  #allocation0 [shape = 'u32[]', space=smem, size = 0x4, offset = 0x4, fixed_abs, tag = 'smem constant byte address 0x4 - core index']
  #allocation1 [shape = 'u32[144,128]{1,0:T(1,128)}', space=vmem, size = 0x12000, scoped, tag = 'internal scratch']
  %s0 = inlined_call_operand.hbm [shape: bf16[16,16,64], index: 0, kind: input, shape index: {}]
  %s1 = inlined_call_operand.hbm [shape: bf16[16,8,32], index: 1, kind: input, shape index: {}]
  %s2 = inlined_call_operand.hbm [shape: bf16[96,256], index: 2, kind: input, shape index: {}]
  %s3 = inlined_call_operand.vmem [shape: f32[1,256], index: 3, kind: input, shape index: {}]
  %s4 = inlined_call_operand.hbm [shape: bf16[256,128], index: 4, kind: input, shape index: {}]
  %s5 = inlined_call_operand.vmem [shape: f32[1,128], index: 5, kind: input, shape index: {}]
  %s6 = inlined_call_operand.hbm [shape: f32[16,128], index: 6, kind: output, shape index: {}]
  %s7 = sld [smem:[#allocation0]]
  $region73: #{tpu_custom_call.1} parent=0
    _
  %s9 = ssub.s32 1, %s7
  %s10 = scalar_select 0, %s9, %s7
  $region1: #{tpu_custom_call.1} parent=0
    #allocation2 [shape = 'u8[65536]{0}', space=vmem, size = 0x10000, scoped, tag = 'input window, operand 0']
    #allocation3 [shape = 's32[2]{0}', space=sflag, size = 0x8, scoped, tag = 'scoped memory for tpu_custom_call.1']
    #allocation4 [shape = 's32[2]{0}', space=sflag, size = 0x8, scoped, tag = 'scoped memory for tpu_custom_call.1']
    #allocation5 [shape = 'u8[32768]{0}', space=vmem, size = 0x8000, scoped, tag = 'input window, operand 1']
    #allocation6 [shape = 's32[2]{0}', space=sflag, size = 0x8, scoped, tag = 'scoped memory for tpu_custom_call.1']
    #allocation7 [shape = 'u8[49152]{0}', space=vmem, size = 0xc000, scoped, tag = 'input window, operand 2, single buffered']
    #allocation8 [shape = 'u8[65536]{0}', space=vmem, size = 0x10000, scoped, tag = 'input window, operand 4, single buffered']
    #allocation9 [shape = 's32[1]{0}', space=sflag, size = 0x4, scoped, tag = 'scoped memory for tpu_custom_call.1']
    #allocation10 [shape = 'u8[8192]{0}', space=vmem, size = 0x2000, scoped, tag = 'output window, operand 0']
    %11 = vsyncpa [#allocation3], 0
    %s12 = scalar_lea.sflag [#allocation3], 1
    %13 = vsyncpa %s12, 0
    %14 = vsyncpa [#allocation6], 0
    %s15 = scalar_lea.sflag [#allocation6], 1
    %16 = vsyncpa %s15, 0
    %17 = vsyncpa [#allocation9], 0
    %18 = vsyncpa [#allocation4], 0
    %s19 = scalar_lea.sflag [#allocation4], 1
    %20 = vsyncpa %s19, 0
    loop: start=0, step=1, limit=4
    $region2: #{tpu_custom_call.1} parent=1 // loop_pre_header
      _
    $region3: #{tpu_custom_call.1} parent=1 // loop_header
      %s22 = sphi 0, %s26
      %p23 = scmp.ge.s32.totalorder %s22, 4
      %s32 = sphi 0, %s34
      %s35 = sphi 0, %s32
      %s36 = sphi 0, %s35
      %s52 = sphi 0, %s36
      %s58 = sphi 0, %s60
      %s61 = sphi 0, %s58
      %s62 = sphi 0, %s61
      %s78 = sphi 0, %s62
      %s82 = sphi 0, %s82
      %s84 = sphi 0, %s82
      %s85 = sphi 0, %s84
      %s99 = sphi 0, %s85
      %s103 = sphi 0, %s103
      %s105 = sphi 0, %s103
      %s106 = sphi 0, %s105
      %s120 = sphi 0, %s106
      %s124 = sphi 0, %s124
      %s126 = sphi 0, %s124
      %s127 = sphi 0, %s126
      %s141 = sphi 0, %s127
      %s145 = sphi 0, %s145
      %s147 = sphi 0, %s145
      %s148 = sphi 0, %s147
      %s162 = sphi 0, %s148
      %s168 = sphi 0, %s170
      %s171 = sphi 0, %s168
      %s172 = sphi 0, %s171
      %s188 = sphi 0, %s172
    $region4: #{tpu_custom_call.1} parent=1 // loop_header_branch
      %25 = sbr.rel (%p23) target = $region8
    $region5: #{tpu_custom_call.1} parent=1 // loop_body
      %s27 = ssub.s32 %s22, 1
      %s28 = ssub.s32 %s22, 2
      %s29 = sadd.s32 %s22, 1
      %s30 = ssub.s32 %s22, %s29
      %p31 = scmp.eq.s32.totalorder %s30, 0
      %s33 = sadd.s32 %s32, 1
      %s34 = scalar_select %p31, %s32, %s33
      %p37 = pneg %p31
      %p38 = scmp.eq.s32.totalorder %s22, 1
      %p39 = por %p37, %p38
      %p40 = scmp.ne.s32.totalorder %s32, %s35
      %p41 = scmp.eq.s32.totalorder %s22, 0
      %p42 = por %p40, %p41
      %p43 = scmp.ne.s32.totalorder %s32, %s35
      %p44 = scmp.eq.s32.totalorder %s27, 1
      %p45 = por %p43, %p44
      %p46 = scmp.ne.s32.totalorder %s35, %s36
      %p47 = scmp.eq.s32.totalorder %s27, 0
      %p48 = por %p46, %p47
      %p49 = scmp.ne.s32.totalorder %s35, %s36
      %p50 = scmp.eq.s32.totalorder %s28, 1
      %p51 = por %p49, %p50
      %p53 = scmp.ne.s32.totalorder %s36, %s52
      %p54 = scmp.eq.s32.totalorder %s28, 0
      %p55 = por %p53, %p54
      %s56 = ssub.s32 %s22, %s29
      %p57 = scmp.eq.s32.totalorder %s56, 0
      %s59 = sadd.s32 %s58, 1
      %s60 = scalar_select %p57, %s58, %s59
      %p63 = pneg %p57
      %p64 = scmp.eq.s32.totalorder %s22, 1
      %p65 = por %p63, %p64
      %p66 = scmp.ne.s32.totalorder %s58, %s61
      %p67 = scmp.eq.s32.totalorder %s22, 0
      %p68 = por %p66, %p67
      %p69 = scmp.ne.s32.totalorder %s58, %s61
      %p70 = scmp.eq.s32.totalorder %s27, 1
      %p71 = por %p69, %p70
      %p72 = scmp.ne.s32.totalorder %s61, %s62
      %p73 = scmp.eq.s32.totalorder %s27, 0
      %p74 = por %p72, %p73
      %p75 = scmp.ne.s32.totalorder %s61, %s62
      %p76 = scmp.eq.s32.totalorder %s28, 1
      %p77 = por %p75, %p76
      %p79 = scmp.ne.s32.totalorder %s62, %s78
      %p80 = scmp.eq.s32.totalorder %s28, 0
      %p81 = por %p79, %p80
      %s83 = sadd.s32 %s82, 1
      %p86 = scmp.eq.s32.totalorder %s22, 1
      %p87 = scmp.ne.s32.totalorder %s82, %s84
      %p88 = scmp.eq.s32.totalorder %s22, 0
      %p89 = por %p87, %p88
      %p90 = scmp.ne.s32.totalorder %s82, %s84
      %p91 = scmp.eq.s32.totalorder %s27, 1
      %p92 = por %p90, %p91
      %p93 = scmp.ne.s32.totalorder %s84, %s85
      %p94 = scmp.eq.s32.totalorder %s27, 0
      %p95 = por %p93, %p94
      %p96 = scmp.ne.s32.totalorder %s84, %s85
      %p97 = scmp.eq.s32.totalorder %s28, 1
      %p98 = por %p96, %p97
      %p100 = scmp.ne.s32.totalorder %s85, %s99
      %p101 = scmp.eq.s32.totalorder %s28, 0
      %p102 = por %p100, %p101
      %s104 = sadd.s32 %s103, 1
      %p107 = scmp.eq.s32.totalorder %s22, 1
      %p108 = scmp.ne.s32.totalorder %s103, %s105
      %p109 = scmp.eq.s32.totalorder %s22, 0
      %p110 = por %p108, %p109
      %p111 = scmp.ne.s32.totalorder %s103, %s105
      %p112 = scmp.eq.s32.totalorder %s27, 1
      %p113 = por %p111, %p112
      %p114 = scmp.ne.s32.totalorder %s105, %s106
      %p115 = scmp.eq.s32.totalorder %s27, 0
      %p116 = por %p114, %p115
      %p117 = scmp.ne.s32.totalorder %s105, %s106
      %p118 = scmp.eq.s32.totalorder %s28, 1
      %p119 = por %p117, %p118
      %p121 = scmp.ne.s32.totalorder %s106, %s120
      %p122 = scmp.eq.s32.totalorder %s28, 0
      %p123 = por %p121, %p122
      %s125 = sadd.s32 %s124, 1
      %p128 = scmp.eq.s32.totalorder %s22, 1
      %p129 = scmp.ne.s32.totalorder %s124, %s126
      %p130 = scmp.eq.s32.totalorder %s22, 0
      %p131 = por %p129, %p130
      %p132 = scmp.ne.s32.totalorder %s124, %s126
      %p133 = scmp.eq.s32.totalorder %s27, 1
      %p134 = por %p132, %p133
      %p135 = scmp.ne.s32.totalorder %s126, %s127
      %p136 = scmp.eq.s32.totalorder %s27, 0
      %p137 = por %p135, %p136
      %p138 = scmp.ne.s32.totalorder %s126, %s127
      %p139 = scmp.eq.s32.totalorder %s28, 1
      %p140 = por %p138, %p139
      %p142 = scmp.ne.s32.totalorder %s127, %s141
      %p143 = scmp.eq.s32.totalorder %s28, 0
      %p144 = por %p142, %p143
      %s146 = sadd.s32 %s145, 1
      %p149 = scmp.eq.s32.totalorder %s22, 1
      %p150 = scmp.ne.s32.totalorder %s145, %s147
      %p151 = scmp.eq.s32.totalorder %s22, 0
      %p152 = por %p150, %p151
      %p153 = scmp.ne.s32.totalorder %s145, %s147
      %p154 = scmp.eq.s32.totalorder %s27, 1
      %p155 = por %p153, %p154
      %p156 = scmp.ne.s32.totalorder %s147, %s148
      %p157 = scmp.eq.s32.totalorder %s27, 0
      %p158 = por %p156, %p157
      %p159 = scmp.ne.s32.totalorder %s147, %s148
      %p160 = scmp.eq.s32.totalorder %s28, 1
      %p161 = por %p159, %p160
      %p163 = scmp.ne.s32.totalorder %s148, %s162
      %p164 = scmp.eq.s32.totalorder %s28, 0
      %p165 = por %p163, %p164
      %s166 = ssub.s32 %s22, %s29
      %p167 = scmp.eq.s32.totalorder %s166, 0
      %s169 = sadd.s32 %s168, 1
      %s170 = scalar_select %p167, %s168, %s169
      %p173 = pneg %p167
      %p174 = scmp.eq.s32.totalorder %s22, 1
      %p175 = por %p173, %p174
      %p176 = scmp.ne.s32.totalorder %s168, %s171
      %p177 = scmp.eq.s32.totalorder %s22, 0
      %p178 = por %p176, %p177
      %p179 = scmp.ne.s32.totalorder %s168, %s171
      %p180 = scmp.eq.s32.totalorder %s27, 1
      %p181 = por %p179, %p180
      %p182 = scmp.ne.s32.totalorder %s171, %s172
      %p183 = scmp.eq.s32.totalorder %s27, 0
      %p184 = por %p182, %p183
      %p185 = scmp.ne.s32.totalorder %s171, %s172
      %p186 = scmp.eq.s32.totalorder %s28, 1
      %p187 = por %p185, %p186
      %p189 = scmp.ne.s32.totalorder %s172, %s188
      %p190 = scmp.eq.s32.totalorder %s28, 0
      %p191 = por %p189, %p190
      %p192 = scmp.le.s32.totalorder 1, %s22
      %p193 = scmp.lt.s32.totalorder %s22, 3
      %p194 = pnand %p192, %p193
      %p195 = pneg %p194
      // Predicated region
      $region9: #{tpu_custom_call.1} parent=5 // pred_check
        _
      $region10: #{tpu_custom_call.1} parent=5 // pred_check_branch
        %197 = sbr.rel (%p194) target = $region12
      $region11: #{tpu_custom_call.1} parent=5 // pred_region
        %s198 = ssub.s32 %s22, 1
        // Predicated region
        $region13: #{tpu_custom_call.1} parent=11 // pred_check
          %p199 = pneg %p95
        $region14: #{tpu_custom_call.1} parent=11 // pred_check_branch
          %201 = sbr.rel (%p199) target = $region16
        $region15: #{tpu_custom_call.1} parent=11 // pred_region
          %s203 = ssub.s32 1536, 1536
          %204 = vsyncadd [#allocation6], %s203
          %s205 = sshll.u32 [#allocation7], 4
          %s206 = int_to_ptr.vmem [resolvable:$true] %s205
          %211 = dma.hbm_to_vmem [thread:$0]  %s2, 1536, %s206, [#allocation6], 128, 128, 8
        $region16: #{tpu_custom_call.1} parent=11 // pred_fallthru
          _
        // Predicated region
        $region17: #{tpu_custom_call.1} parent=11 // pred_check
          %p212 = pneg %p116
        $region18: #{tpu_custom_call.1} parent=11 // pred_check_branch
          %214 = sbr.rel (%p212) target = $region20
        $region19: #{tpu_custom_call.1} parent=11 // pred_region
          _
        $region20: #{tpu_custom_call.1} parent=11 // pred_fallthru
          _
        // Predicated region
        $region21: #{tpu_custom_call.1} parent=11 // pred_check
          %p215 = pneg %p137
        $region22: #{tpu_custom_call.1} parent=11 // pred_check_branch
          %217 = sbr.rel (%p215) target = $region24
        $region23: #{tpu_custom_call.1} parent=11 // pred_region
          %s219 = ssub.s32 2048, 2048
          %220 = vsyncadd [#allocation9], %s219
          %s221 = sshll.u32 [#allocation8], 4
          %s222 = int_to_ptr.vmem [resolvable:$true] %s221
          %227 = dma.hbm_to_vmem [thread:$0]  %s4, 2048, %s222, [#allocation9], 64, 64, 4
        $region24: #{tpu_custom_call.1} parent=11 // pred_fallthru
          _
        // Predicated region
        $region25: #{tpu_custom_call.1} parent=11 // pred_check
          %p228 = pneg %p158
        $region26: #{tpu_custom_call.1} parent=11 // pred_check_branch
          %230 = sbr.rel (%p228) target = $region28
        $region27: #{tpu_custom_call.1} parent=11 // pred_region
          _
        $region28: #{tpu_custom_call.1} parent=11 // pred_fallthru
          _
      $region12: #{tpu_custom_call.1} parent=5 // pred_fallthru
        _
      %p231 = scmp.lt.s32.totalorder %s22, 2
      // Predicated region
      $region29: #{tpu_custom_call.1} parent=5 // pred_check
        %p232 = pneg %p231
      $region30: #{tpu_custom_call.1} parent=5 // pred_check_branch
        %234 = sbr.rel (%p232) target = $region32
      $region31: #{tpu_custom_call.1} parent=5 // pred_region
        // Predicated region
        $region33: #{tpu_custom_call.1} parent=31 // pred_check
          %p235 = pneg %p42
        $region34: #{tpu_custom_call.1} parent=31 // pred_check_branch
          %237 = sbr.rel (%p235) target = $region36
        $region35: #{tpu_custom_call.1} parent=31 // pred_region
          %s238 = sand.u32 %s32, 1
          %s239 = scalar_lea.sflag [#allocation3], %s238
          %s240 = sand.u32 %s32, 1
          %s241 = smul.addr %s240, 64
          %s242 = scalar_lea.vmem [#allocation2], %s241
          %s243 = smul.u32 8, %s22
          %s245 = ssub.s32 1024, 1024
          %246 = vsyncadd %s239, %s245
          %s247 = smul.addr %s243, 2
          %s248 = smul.addr %s247, 64
          %s249 = scalar_lea.hbm %s0, %s248
          %s250 = sshll.u32 %s242, 4
          %s251 = int_to_ptr.vmem [resolvable:$true] %s250
          %256 = dma.hbm_to_vmem [thread:$0]  %s249, 1024, %s251, %s239, 64, 64, 4
        $region36: #{tpu_custom_call.1} parent=31 // pred_fallthru
          _
        // Predicated region
        $region37: #{tpu_custom_call.1} parent=31 // pred_check
          %p257 = pneg %p68
        $region38: #{tpu_custom_call.1} parent=31 // pred_check_branch
          %259 = sbr.rel (%p257) target = $region40
        $region39: #{tpu_custom_call.1} parent=31 // pred_region
          %s260 = sand.u32 %s22, 1
          %s261 = scalar_lea.sflag [#allocation6], %s260
          %s262 = sand.u32 %s58, 1
          %s263 = smul.addr %s262, 32
          %s264 = scalar_lea.vmem [#allocation5], %s263
          %s265 = smul.u32 8, %s22
          %s267 = ssub.s32 512, 512
          %268 = vsyncadd %s261, %s267
          %s269 = smul.addr %s265, 64
          %s270 = scalar_lea.hbm %s1, %s269
          %s271 = sshll.u32 %s264, 4
          %s272 = int_to_ptr.vmem [resolvable:$true] %s271
          %277 = dma.hbm_to_vmem [thread:$0]  %s270, 512, %s272, %s261, 64, 64, 4
        $region40: #{tpu_custom_call.1} parent=31 // pred_fallthru
          _
      $region32: #{tpu_custom_call.1} parent=5 // pred_fallthru
        _
      %p278 = scmp.le.s32.totalorder 1, %s22
      %p279 = scmp.lt.s32.totalorder %s22, 3
      %p280 = pnand %p278, %p279
      %p281 = pneg %p280
      // Predicated region
      $region41: #{tpu_custom_call.1} parent=5 // pred_check
        _
      $region42: #{tpu_custom_call.1} parent=5 // pred_check_branch
        %283 = sbr.rel (%p280) target = $region44
      $region43: #{tpu_custom_call.1} parent=5 // pred_region
        %s284 = ssub.s32 %s22, 1
        %s285 = sand.u32 %s35, 1
        %s286 = scalar_lea.sflag [#allocation3], %s285
        %s287 = sand.u32 %s35, 1
        %s288 = smul.addr %s287, 64
        %s289 = scalar_lea.vmem [#allocation2], %s288
        // Predicated region
        $region45: #{tpu_custom_call.1} parent=43 // pred_check
          %p290 = pneg %p48
        $region46: #{tpu_custom_call.1} parent=43 // pred_check_branch
          %292 = sbr.rel (%p290) target = $region48
        $region47: #{tpu_custom_call.1} parent=43 // pred_region
          %293 = dma.done %s286, 1024
        $region48: #{tpu_custom_call.1} parent=43 // pred_fallthru
          _
        %s294 = sand.u32 %s27, 1
        %s295 = scalar_lea.sflag [#allocation6], %s294
        %s296 = sand.u32 %s61, 1
        %s297 = smul.addr %s296, 32
        %s298 = scalar_lea.vmem [#allocation5], %s297
        // Predicated region
        $region49: #{tpu_custom_call.1} parent=43 // pred_check
          %p299 = pneg %p74
        $region50: #{tpu_custom_call.1} parent=43 // pred_check_branch
          %301 = sbr.rel (%p299) target = $region52
        $region51: #{tpu_custom_call.1} parent=43 // pred_region
          %302 = dma.done %s295, 512
        $region52: #{tpu_custom_call.1} parent=43 // pred_fallthru
          _
        // Predicated region
        $region53: #{tpu_custom_call.1} parent=43 // pred_check
          %p303 = pneg %p95
        $region54: #{tpu_custom_call.1} parent=43 // pred_check_branch
          %305 = sbr.rel (%p303) target = $region56
        $region55: #{tpu_custom_call.1} parent=43 // pred_region
          %306 = dma.done [#allocation6], 1536
        $region56: #{tpu_custom_call.1} parent=43 // pred_fallthru
          _
        // Predicated region
        $region57: #{tpu_custom_call.1} parent=43 // pred_check
          %p307 = pneg %p137
        $region58: #{tpu_custom_call.1} parent=43 // pred_check_branch
          %309 = sbr.rel (%p307) target = $region60
        $region59: #{tpu_custom_call.1} parent=43 // pred_region
          %310 = dma.done [#allocation9], 2048
        $region60: #{tpu_custom_call.1} parent=43 // pred_fallthru
          _
        %s311 = sand.u32 %s35, 1
        %s312 = scalar_lea.sflag [#allocation3], %s311
        %s313 = sand.u32 %s35, 1
        %s314 = smul.addr %s313, 64
        %s315 = scalar_lea.vmem [#allocation2], %s314
        %p316 = pneg %p48
        %p317 = pneg %p45
        %s318 = sand.u32 %s27, 1
        %s319 = scalar_lea.sflag [#allocation6], %s318
        %s320 = sand.u32 %s61, 1
        %s321 = smul.addr %s320, 32
        %s322 = scalar_lea.vmem [#allocation5], %s321
        %p323 = pneg %p74
        %p324 = pneg %p71
        %p325 = pneg %p95
        %p326 = pneg %p92
        %p327 = pneg %p116
        %p328 = pneg %p113
        %p329 = pneg %p137
        %p330 = pneg %p134
        %p331 = pneg %p158
        %p332 = pneg %p155
        %p333 = pneg %p184
        %p334 = pneg %p181
        %s335 = sand.u32 %s171, 1
        %s336 = scalar_lea.sflag [#allocation4], %s335
        %s337 = sand.u32 %s171, 1
        %s338 = smul.addr %s337, 8
        %s339 = scalar_lea.vmem [#allocation10], %s338
        %s340 = smul.u32 8, %s27
        %s341 = smul.u32 8, %s27
        %v343 = vld [vmem:[%s289] sm:$0xf]
        %v344 = vld [vmem:[%s289 + $0x4] sm:$0xf]
        %v345 = vld [vmem:[%s289 + $0x8] sm:$0xf]
        %v346 = vld [vmem:[%s289 + $0xc] sm:$0xf]
        %v347 = vld [vmem:[%s289 + $0x10] sm:$0xf]
        %v348 = vld [vmem:[%s289 + $0x14] sm:$0xf]
        %v349 = vld [vmem:[%s289 + $0x18] sm:$0xf]
        %v350 = vld [vmem:[%s289 + $0x1c] sm:$0xf]
        %v351 = vld [vmem:[%s289 + $0x20] sm:$0xf]
        %v352 = vld [vmem:[%s289 + $0x24] sm:$0xf]
        %v353 = vld [vmem:[%s289 + $0x28] sm:$0xf]
        %v354 = vld [vmem:[%s289 + $0x2c] sm:$0xf]
        %v355 = vld [vmem:[%s289 + $0x30] sm:$0xf]
        %v356 = vld [vmem:[%s289 + $0x34] sm:$0xf]
        %v357 = vld [vmem:[%s289 + $0x38] sm:$0xf]
        %v358 = vld [vmem:[%s289 + $0x3c] sm:$0xf]
        %v359 = vunpack.c.l.bf16 %v343
        %v360 = vunpack.c.l.bf16 %v344
        %v361 = vunpack.c.l.bf16 %v345
        %v362 = vunpack.c.l.bf16 %v346
        %v363 = vunpack.c.l.bf16 %v347
        %v364 = vunpack.c.l.bf16 %v348
        %v365 = vunpack.c.l.bf16 %v349
        %v366 = vunpack.c.l.bf16 %v350
        %v367 = vunpack.c.l.bf16 %v351
        %v368 = vunpack.c.l.bf16 %v352
        %v369 = vunpack.c.l.bf16 %v353
        %v370 = vunpack.c.l.bf16 %v354
        %v371 = vunpack.c.l.bf16 %v355
        %v372 = vunpack.c.l.bf16 %v356
        %v373 = vunpack.c.l.bf16 %v357
        %v374 = vunpack.c.l.bf16 %v358
        %vm375 = vcmask 523264
        %v376 = vsel %vm375, %v359, 0.0
        %v377 = vsel %vm375, %v360, 0.0
        %v378 = vadd.f32 %v376, %v377
        %v379 = vrot.slane %v378, 4
        %v380 = vadd.f32 %v378, %v379
        %v381 = vrot.slane %v380, 2
        %v382 = vadd.f32 %v380, %v381
        %v383 = vrot.slane %v382, 1
        %v384 = vadd.f32 %v382, %v383
        %v385 = vsel %vm375, %v361, 0.0
        %v386 = vsel %vm375, %v362, 0.0
        %v387 = vadd.f32 %v385, %v386
        %v388 = vrot.slane %v387, 4
        %v389 = vadd.f32 %v387, %v388
        %v390 = vrot.slane %v389, 2
        %v391 = vadd.f32 %v389, %v390
        %v392 = vrot.slane %v391, 1
        %v393 = vadd.f32 %v391, %v392
        %v394 = vsel %vm375, %v363, 0.0
        %v395 = vsel %vm375, %v364, 0.0
        %v396 = vadd.f32 %v394, %v395
        %v397 = vrot.slane %v396, 4
        %v398 = vadd.f32 %v396, %v397
        %v399 = vrot.slane %v398, 2
        %v400 = vadd.f32 %v398, %v399
        %v401 = vrot.slane %v400, 1
        %v402 = vadd.f32 %v400, %v401
        %v403 = vsel %vm375, %v365, 0.0
        %v404 = vsel %vm375, %v366, 0.0
        %v405 = vadd.f32 %v403, %v404
        %v406 = vrot.slane %v405, 4
        %v407 = vadd.f32 %v405, %v406
        %v408 = vrot.slane %v407, 2
        %v409 = vadd.f32 %v407, %v408
        %v410 = vrot.slane %v409, 1
        %v411 = vadd.f32 %v409, %v410
        %v412 = vsel %vm375, %v367, 0.0
        %v413 = vsel %vm375, %v368, 0.0
        %v414 = vadd.f32 %v412, %v413
        %v415 = vrot.slane %v414, 4
        %v416 = vadd.f32 %v414, %v415
        %v417 = vrot.slane %v416, 2
        %v418 = vadd.f32 %v416, %v417
        %v419 = vrot.slane %v418, 1
        %v420 = vadd.f32 %v418, %v419
        %v421 = vsel %vm375, %v369, 0.0
        %v422 = vsel %vm375, %v370, 0.0
        %v423 = vadd.f32 %v421, %v422
        %v424 = vrot.slane %v423, 4
        %v425 = vadd.f32 %v423, %v424
        %v426 = vrot.slane %v425, 2
        %v427 = vadd.f32 %v425, %v426
        %v428 = vrot.slane %v427, 1
        %v429 = vadd.f32 %v427, %v428
        %v430 = vsel %vm375, %v371, 0.0
        %v431 = vsel %vm375, %v372, 0.0
        %v432 = vadd.f32 %v430, %v431
        %v433 = vrot.slane %v432, 4
        %v434 = vadd.f32 %v432, %v433
        %v435 = vrot.slane %v434, 2
        %v436 = vadd.f32 %v434, %v435
        %v437 = vrot.slane %v436, 1
        %v438 = vadd.f32 %v436, %v437
        %v439 = vsel %vm375, %v373, 0.0
        %v440 = vsel %vm375, %v374, 0.0
        %v441 = vadd.f32 %v439, %v440
        %v442 = vrot.slane %v441, 4
        %v443 = vadd.f32 %v441, %v442
        %v444 = vrot.slane %v443, 2
        %v445 = vadd.f32 %v443, %v444
        %v446 = vrot.slane %v445, 1
        %v447 = vadd.f32 %v445, %v446
        %v448 = vmul.f32 %v384, %v384
        %v449 = vmul.f32 %v393, %v393
        %v450 = vmul.f32 %v402, %v402
        %v451 = vmul.f32 %v411, %v411
        %v452 = vmul.f32 %v420, %v420
        %v453 = vmul.f32 %v429, %v429
        %v454 = vmul.f32 %v438, %v438
        %v455 = vmul.f32 %v447, %v447
        %vm464 = vcmask 1041409
        %v465 = vsel %vm464, %v449, %v448
        %vm466 = vcmask 1042434
        %v467 = vsel %vm466, %v450, %v465
        %vm468 = vcmask 1043459
        %v469 = vsel %vm468, %v451, %v467
        %vm470 = vcmask 1044484
        %v471 = vsel %vm470, %v452, %v469
        %vm472 = vcmask 1045509
        %v473 = vsel %vm472, %v453, %v471
        %vm474 = vcmask 1046534
        %v475 = vsel %vm474, %v454, %v473
        %vm476 = vcmask 1047559
        %v477 = vsel %vm476, %v455, %v475
        %v479 = vsel %vm375, %v477, 0.0
        %480 = vadd.xlane.f32.xlu0 %v479
        %v481 = vpop.xlane.xlu0 %480
        %v482 = vmax.f32 %v481, 1e-24
        %v483 = vrsqrt.pop %v482
        %v485 = vrot.slane %v483, 1
        %v486 = vrot.slane %v483, 2
        %v487 = vrot.slane %v483, 3
        %v488 = vrot.slane %v483, 4
        %v489 = vrot.slane %v483, 5
        %v490 = vrot.slane %v483, 6
        %v491 = vrot.slane %v483, 7
        %v500 = vmul.f32 %v384, %v483
        %v501 = vmul.f32 %v393, %v485
        %v502 = vmul.f32 %v402, %v486
        %v503 = vmul.f32 %v411, %v487
        %v504 = vmul.f32 %v420, %v488
        %v505 = vmul.f32 %v429, %v489
        %v506 = vmul.f32 %v438, %v490
        %v507 = vmul.f32 %v447, %v491
        %v508 = vld [vmem:[%s298] sm:$0xf]
        %v509 = vld [vmem:[%s298 + $0x4] sm:$0xf]
        %v510 = vld [vmem:[%s298 + $0x8] sm:$0xf]
        %v511 = vld [vmem:[%s298 + $0xc] sm:$0xf]
        %v512 = vld [vmem:[%s298 + $0x10] sm:$0xf]
        %v513 = vld [vmem:[%s298 + $0x14] sm:$0xf]
        %v514 = vld [vmem:[%s298 + $0x18] sm:$0xf]
        %v515 = vld [vmem:[%s298 + $0x1c] sm:$0xf]
        %v516 = vunpack.c.l.bf16 %v508
        %v517 = vunpack.c.l.bf16 %v509
        %v518 = vunpack.c.l.bf16 %v510
        %v519 = vunpack.c.l.bf16 %v511
        %v520 = vunpack.c.l.bf16 %v512
        %v521 = vunpack.c.l.bf16 %v513
        %v522 = vunpack.c.l.bf16 %v514
        %v523 = vunpack.c.l.bf16 %v515
        %vm524 = vcmask 261120
        %v525 = vsel %vm524, %v516, 0.0
        %v526 = vrot.slane %v525, 4
        %v527 = vadd.f32 %v525, %v526
        %v528 = vrot.slane %v527, 2
        %v529 = vadd.f32 %v527, %v528
        %v530 = vrot.slane %v529, 1
        %v531 = vadd.f32 %v529, %v530
        %v532 = vsel %vm524, %v517, 0.0
        %v533 = vrot.slane %v532, 4
        %v534 = vadd.f32 %v532, %v533
        %v535 = vrot.slane %v534, 2
        %v536 = vadd.f32 %v534, %v535
        %v537 = vrot.slane %v536, 1
        %v538 = vadd.f32 %v536, %v537
        %v539 = vsel %vm524, %v518, 0.0
        %v540 = vrot.slane %v539, 4
        %v541 = vadd.f32 %v539, %v540
        %v542 = vrot.slane %v541, 2
        %v543 = vadd.f32 %v541, %v542
        %v544 = vrot.slane %v543, 1
        %v545 = vadd.f32 %v543, %v544
        %v546 = vsel %vm524, %v519, 0.0
        %v547 = vrot.slane %v546, 4
        %v548 = vadd.f32 %v546, %v547
        %v549 = vrot.slane %v548, 2
        %v550 = vadd.f32 %v548, %v549
        %v551 = vrot.slane %v550, 1
        %v552 = vadd.f32 %v550, %v551
        %v553 = vsel %vm524, %v520, 0.0
        %v554 = vrot.slane %v553, 4
        %v555 = vadd.f32 %v553, %v554
        %v556 = vrot.slane %v555, 2
        %v557 = vadd.f32 %v555, %v556
        %v558 = vrot.slane %v557, 1
        %v559 = vadd.f32 %v557, %v558
        %v560 = vsel %vm524, %v521, 0.0
        %v561 = vrot.slane %v560, 4
        %v562 = vadd.f32 %v560, %v561
        %v563 = vrot.slane %v562, 2
        %v564 = vadd.f32 %v562, %v563
        %v565 = vrot.slane %v564, 1
        %v566 = vadd.f32 %v564, %v565
        %v567 = vsel %vm524, %v522, 0.0
        %v568 = vrot.slane %v567, 4
        %v569 = vadd.f32 %v567, %v568
        %v570 = vrot.slane %v569, 2
        %v571 = vadd.f32 %v569, %v570
        %v572 = vrot.slane %v571, 1
        %v573 = vadd.f32 %v571, %v572
        %v574 = vsel %vm524, %v523, 0.0
        %v575 = vrot.slane %v574, 4
        %v576 = vadd.f32 %v574, %v575
        %v577 = vrot.slane %v576, 2
        %v578 = vadd.f32 %v576, %v577
        %v579 = vrot.slane %v578, 1
        %v580 = vadd.f32 %v578, %v579
        %v581 = vmul.f32 %v531, %v531
        %v582 = vmul.f32 %v538, %v538
        %v583 = vmul.f32 %v545, %v545
        %v584 = vmul.f32 %v552, %v552
        %v585 = vmul.f32 %v559, %v559
        %v586 = vmul.f32 %v566, %v566
        %v587 = vmul.f32 %v573, %v573
        %v588 = vmul.f32 %v580, %v580
        %v597 = vsel %vm464, %v582, %v581
        %v598 = vsel %vm466, %v583, %v597
        %v599 = vsel %vm468, %v584, %v598
        %v600 = vsel %vm470, %v585, %v599
        %v601 = vsel %vm472, %v586, %v600
        %v602 = vsel %vm474, %v587, %v601
        %v603 = vsel %vm476, %v588, %v602
        %v605 = vsel %vm524, %v603, 0.0
        %606 = vadd.xlane.f32.xlu0 %v605
        %v607 = vpop.xlane.xlu0 %606
        %v608 = vmax.f32 %v607, 1e-24
        %v609 = vrsqrt.pop %v608
        %v611 = vrot.slane %v609, 1
        %v612 = vrot.slane %v609, 2
        %v613 = vrot.slane %v609, 3
        %v614 = vrot.slane %v609, 4
        %v615 = vrot.slane %v609, 5
        %v616 = vrot.slane %v609, 6
        %v617 = vrot.slane %v609, 7
        %v626 = vmul.f32 %v531, %v609
        %v627 = vmul.f32 %v538, %v611
        %v628 = vmul.f32 %v545, %v612
        %v629 = vmul.f32 %v552, %v613
        %v630 = vmul.f32 %v559, %v614
        %v631 = vmul.f32 %v566, %v615
        %v632 = vmul.f32 %v573, %v616
        %v633 = vmul.f32 %v580, %v617
        %v642 = vrot.slane %v501, 7
        %v643 = vsel %vm464, %v642, %v500
        %v644 = vrot.slane %v502, 6
        %v645 = vsel %vm466, %v644, %v643
        %v646 = vrot.slane %v503, 5
        %v647 = vsel %vm468, %v646, %v645
        %v648 = vrot.slane %v504, 4
        %v649 = vsel %vm470, %v648, %v647
        %v650 = vrot.slane %v505, 3
        %v651 = vsel %vm472, %v650, %v649
        %v652 = vrot.slane %v506, 2
        %v653 = vsel %vm474, %v652, %v651
        %v654 = vrot.slane %v507, 1
        %v655 = vsel %vm476, %v654, %v653
        %v665 = vrot.slane %v627, 7
        %v666 = vsel %vm464, %v665, %v626
        %v667 = vrot.slane %v628, 6
        %v668 = vsel %vm466, %v667, %v666
        %v669 = vrot.slane %v629, 5
        %v670 = vsel %vm468, %v669, %v668
        %v671 = vrot.slane %v630, 4
        %v672 = vsel %vm470, %v671, %v670
        %v673 = vrot.slane %v631, 3
        %v674 = vsel %vm472, %v673, %v672
        %v675 = vrot.slane %v632, 2
        %v676 = vsel %vm474, %v675, %v674
        %v677 = vrot.slane %v633, 1
        %v678 = vsel %vm476, %v677, %v676
        %679 = vrot.lane.b32.xlu0 %v678, 64
        %v680 = vpop.permute.xlu0 %679
        %v682 = vsel %vm375, %v655, %v680
        %v683 = vpack.c.bf16 %v682, %v682
        %v684 = vld [vmem:[#allocation7] sm:$0xff]
        %v685 = vld [vmem:[#allocation7 + $0x8] sm:$0xff]
        %v686 = vld [vmem:[#allocation7 + $0x10] sm:$0xff]
        %v687 = vld [vmem:[#allocation7 + $0x18] sm:$0xff]
        %v688 = vld [vmem:[#allocation7 + $0x20] sm:$0xff]
        %v689 = vld [vmem:[#allocation7 + $0x28] sm:$0xff]
        %v690 = vld [vmem:[#allocation7 + $0x30] sm:$0xff]
        %v691 = vld [vmem:[#allocation7 + $0x38] sm:$0xff]
        %v692 = vld [vmem:[#allocation7 + $0x40] sm:$0xff]
        %v693 = vld [vmem:[#allocation7 + $0x48] sm:$0xff]
        %v694 = vld [vmem:[#allocation7 + $0x50] sm:$0xff]
        %v695 = vld [vmem:[#allocation7 + $0x58] sm:$0xff]
        %v696 = vld [vmem:[%s3] sm:$0x3]
        %v698 = vlaneseq
        %v699 = vshrl.u32 %v698, 7
        %v700 = vsub.s32 0, %v699
        %v701 = vrot.slane %v696, %v700
        %v702 = vlaneseq
        %v703 = vshrl.u32 %v702, 7
        %v704 = vsub.s32 1, %v703
        %v705 = vrot.slane %v696, %v704
        %v720 = vunpack.c.l.b16 %v684
        %v721 = vunpack.c.h.b16 %v684
        %v722 = vunpack.c.l.b16 %v685
        %v723 = vunpack.c.h.b16 %v685
        %v724 = vunpack.c.l.b16 %v686
        %v725 = vunpack.c.h.b16 %v686
        %v726 = vunpack.c.l.b16 %v687
        %v727 = vunpack.c.h.b16 %v687
        %v728 = vunpack.c.l.b16 %v688
        %v729 = vunpack.c.h.b16 %v688
        %v730 = vunpack.c.l.b16 %v689
        %v731 = vunpack.c.h.b16 %v689
        %v732 = vunpack.c.l.b16 %v690
        %v733 = vunpack.c.h.b16 %v690
        %v734 = vunpack.c.l.b16 %v691
        %v735 = vunpack.c.h.b16 %v691
        %v736 = vunpack.c.l.b16 %v692
        %v737 = vunpack.c.h.b16 %v692
        %v738 = vunpack.c.l.b16 %v693
        %v739 = vunpack.c.h.b16 %v693
        %v740 = vunpack.c.l.b16 %v694
        %v741 = vunpack.c.h.b16 %v694
        %v742 = vunpack.c.l.b16 %v695
        %v743 = vunpack.c.h.b16 %v695
        %v744 = vpack.c.b16 %v722, %v720
        %v745 = vpack.c.b16 %v723, %v721
        %v746 = vpack.c.b16 %v726, %v724
        %v747 = vpack.c.b16 %v727, %v725
        %v748 = vpack.c.b16 %v730, %v728
        %v749 = vpack.c.b16 %v731, %v729
        %v750 = vpack.c.b16 %v734, %v732
        %v751 = vpack.c.b16 %v735, %v733
        %v752 = vpack.c.b16 %v738, %v736
        %v753 = vpack.c.b16 %v739, %v737
        %v754 = vpack.c.b16 %v742, %v740
        %v755 = vpack.c.b16 %v743, %v741
        %vm768 = vcmask 785408
        %v770 = vsel %vm768, %v683, 0
        %772 = vmatprep.subr.bf16.mxu0 %v745
        %773 = vmatpush1.bf16.msra.mxu0 %v744
        %774 = vmatprep.subr.bf16.mxu0 %v747
        %775 = vmatpush1.bf16.msra.mxu0 %v746
        %776 = vmatprep.subr.bf16.mxu0 %v749
        %777 = vmatpush1.bf16.msra.mxu0 %v748
        %778 = vmatprep.subr.bf16.mxu0 %v751
        %779 = vmatpush1.bf16.msra.mxu0 %v750
        %780 = vmatprep.subr.bf16.mxu0 %v753
        %781 = vmatpush1.bf16.msra.mxu0 %v752
        %782 = vmatprep.subr.bf16.mxu0 %v755
        %783 = vmatpush1.bf16.msra.mxu0 %v754
        %784 = vmatprep.subr.bf16.mxu0 0
        %785 = vmatpush1.bf16.msra.mxu0 0
        %786 = vmatprep.subr.bf16.mxu0 0
        %787 = vmatpush1.bf16.msra.mxu0 0
        %788 = vmatprep.subr.bf16.mxu0 0
        %789 = vmatpush1.bf16.msra.mxu0 0
        %790 = vmatprep.subr.bf16.mxu0 0
        %791 = vmatpush1.bf16.msra.mxu0 0
        %792 = vmatprep.subr.bf16.mxu0 0
        %793 = vmatpush1.bf16.msra.mxu0 0
        %794 = vmatprep.subr.bf16.mxu0 0
        %795 = vmatpush1.bf16.msra.mxu0 0
        %796 = vmatprep.subr.bf16.mxu0 0
        %797 = vmatpush1.bf16.msra.mxu0 0
        %798 = vmatprep.subr.bf16.mxu0 0
        %799 = vmatpush1.bf16.msra.mxu0 0
        %800 = vmatprep.subr.bf16.mxu0 0
        %801 = vmatpush1.bf16.msra.mxu0 0
        %802 = vmatprep.subr.bf16.mxu0 0
        %803 = vmatpush1.bf16.msra.mxu0 0
        %804 = vmatprep.mubr.bf16.mxu0 0
        %805 = vmatmul.mubr.bf16.gmra.mrb[0].mxu0 %v770
        %v806 = vpop.f32.mrb[0].mxu0
        %v807 = vadd.f32 %v701, %v806
        %v808 = vpop.f32.mrb[0].mxu0
        %v809 = vadd.f32 %v705, %v808
        %v810 = vpop.f32.mrb[0].mxu0
        %v811 = vpop.f32.mrb[0].mxu0
        %812 = vdwg.mxu0
        %v813 = vmax.f32 %v807, 0.0
        %v814 = vmax.f32 %v809, 0.0
        %v815 = vpack.c.bf16 %v813, %v813
        %v816 = vpack.c.bf16 %v814, %v814
        %v817 = vld [vmem:[#allocation8] sm:$0xf]
        %v818 = vld [vmem:[#allocation8 + $0x4] sm:$0xf]
        %v819 = vld [vmem:[#allocation8 + $0x8] sm:$0xf]
        %v820 = vld [vmem:[#allocation8 + $0xc] sm:$0xf]
        %v821 = vld [vmem:[#allocation8 + $0x10] sm:$0xf]
        %v822 = vld [vmem:[#allocation8 + $0x14] sm:$0xf]
        %v823 = vld [vmem:[#allocation8 + $0x18] sm:$0xf]
        %v824 = vld [vmem:[#allocation8 + $0x1c] sm:$0xf]
        %v825 = vld [vmem:[#allocation8 + $0x20] sm:$0xf]
        %v826 = vld [vmem:[#allocation8 + $0x24] sm:$0xf]
        %v827 = vld [vmem:[#allocation8 + $0x28] sm:$0xf]
        %v828 = vld [vmem:[#allocation8 + $0x2c] sm:$0xf]
        %v829 = vld [vmem:[#allocation8 + $0x30] sm:$0xf]
        %v830 = vld [vmem:[#allocation8 + $0x34] sm:$0xf]
        %v831 = vld [vmem:[#allocation8 + $0x38] sm:$0xf]
        %v832 = vld [vmem:[#allocation8 + $0x3c] sm:$0xf]
        %v833 = vld [vmem:[#allocation8 + $0x40] sm:$0xf]
        %v834 = vld [vmem:[#allocation8 + $0x44] sm:$0xf]
        %v835 = vld [vmem:[#allocation8 + $0x48] sm:$0xf]
        %v836 = vld [vmem:[#allocation8 + $0x4c] sm:$0xf]
        %v837 = vld [vmem:[#allocation8 + $0x50] sm:$0xf]
        %v838 = vld [vmem:[#allocation8 + $0x54] sm:$0xf]
        %v839 = vld [vmem:[#allocation8 + $0x58] sm:$0xf]
        %v840 = vld [vmem:[#allocation8 + $0x5c] sm:$0xf]
        %v841 = vld [vmem:[#allocation8 + $0x60] sm:$0xf]
        %v842 = vld [vmem:[#allocation8 + $0x64] sm:$0xf]
        %v843 = vld [vmem:[#allocation8 + $0x68] sm:$0xf]
        %v844 = vld [vmem:[#allocation8 + $0x6c] sm:$0xf]
        %v845 = vld [vmem:[#allocation8 + $0x70] sm:$0xf]
        %v846 = vld [vmem:[#allocation8 + $0x74] sm:$0xf]
        %v847 = vld [vmem:[#allocation8 + $0x78] sm:$0xf]
        %v848 = vld [vmem:[#allocation8 + $0x7c] sm:$0xf]
        %v849 = vld [vmem:[%s5] sm:$0x1]
        %v851 = vlaneseq
        %v852 = vshrl.u32 %v851, 7
        %v853 = vsub.s32 0, %v852
        %v854 = vrot.slane %v849, %v853
        %v888 = vunpack.c.l.b16 %v817
        %v889 = vunpack.c.l.b16 %v818
        %v890 = vunpack.c.l.b16 %v819
        %v891 = vunpack.c.l.b16 %v820
        %v892 = vunpack.c.l.b16 %v821
        %v893 = vunpack.c.l.b16 %v822
        %v894 = vunpack.c.l.b16 %v823
        %v895 = vunpack.c.l.b16 %v824
        %v896 = vunpack.c.l.b16 %v825
        %v897 = vunpack.c.l.b16 %v826
        %v898 = vunpack.c.l.b16 %v827
        %v899 = vunpack.c.l.b16 %v828
        %v900 = vunpack.c.l.b16 %v829
        %v901 = vunpack.c.l.b16 %v830
        %v902 = vunpack.c.l.b16 %v831
        %v903 = vunpack.c.l.b16 %v832
        %v904 = vunpack.c.l.b16 %v833
        %v905 = vunpack.c.l.b16 %v834
        %v906 = vunpack.c.l.b16 %v835
        %v907 = vunpack.c.l.b16 %v836
        %v908 = vunpack.c.l.b16 %v837
        %v909 = vunpack.c.l.b16 %v838
        %v910 = vunpack.c.l.b16 %v839
        %v911 = vunpack.c.l.b16 %v840
        %v912 = vunpack.c.l.b16 %v841
        %v913 = vunpack.c.l.b16 %v842
        %v914 = vunpack.c.l.b16 %v843
        %v915 = vunpack.c.l.b16 %v844
        %v916 = vunpack.c.l.b16 %v845
        %v917 = vunpack.c.l.b16 %v846
        %v918 = vunpack.c.l.b16 %v847
        %v919 = vunpack.c.l.b16 %v848
        %v920 = vpack.c.b16 %v889, %v888
        %v921 = vpack.c.b16 %v891, %v890
        %v922 = vpack.c.b16 %v893, %v892
        %v923 = vpack.c.b16 %v895, %v894
        %v924 = vpack.c.b16 %v897, %v896
        %v925 = vpack.c.b16 %v899, %v898
        %v926 = vpack.c.b16 %v901, %v900
        %v927 = vpack.c.b16 %v903, %v902
        %v928 = vpack.c.b16 %v905, %v904
        %v929 = vpack.c.b16 %v907, %v906
        %v930 = vpack.c.b16 %v909, %v908
        %v931 = vpack.c.b16 %v911, %v910
        %v932 = vpack.c.b16 %v913, %v912
        %v933 = vpack.c.b16 %v915, %v914
        %v934 = vpack.c.b16 %v917, %v916
        %v935 = vpack.c.b16 %v919, %v918
        %952 = vmatprep.subr.bf16.mxu0 0
        %953 = vmatpush1.bf16.msra.mxu0 %v920
        %954 = vmatprep.subr.bf16.mxu0 0
        %955 = vmatpush1.bf16.msra.mxu0 %v921
        %956 = vmatprep.subr.bf16.mxu0 0
        %957 = vmatpush1.bf16.msra.mxu0 %v922
        %958 = vmatprep.subr.bf16.mxu0 0
        %959 = vmatpush1.bf16.msra.mxu0 %v923
        %960 = vmatprep.subr.bf16.mxu0 0
        %961 = vmatpush1.bf16.msra.mxu0 %v924
        %962 = vmatprep.subr.bf16.mxu0 0
        %963 = vmatpush1.bf16.msra.mxu0 %v925
        %964 = vmatprep.subr.bf16.mxu0 0
        %965 = vmatpush1.bf16.msra.mxu0 %v926
        %966 = vmatprep.subr.bf16.mxu0 0
        %967 = vmatpush1.bf16.msra.mxu0 %v927
        %968 = vmatprep.subr.bf16.mxu0 0
        %969 = vmatpush1.bf16.msra.mxu0 %v928
        %970 = vmatprep.subr.bf16.mxu0 0
        %971 = vmatpush1.bf16.msra.mxu0 %v929
        %972 = vmatprep.subr.bf16.mxu0 0
        %973 = vmatpush1.bf16.msra.mxu0 %v930
        %974 = vmatprep.subr.bf16.mxu0 0
        %975 = vmatpush1.bf16.msra.mxu0 %v931
        %976 = vmatprep.subr.bf16.mxu0 0
        %977 = vmatpush1.bf16.msra.mxu0 %v932
        %978 = vmatprep.subr.bf16.mxu0 0
        %979 = vmatpush1.bf16.msra.mxu0 %v933
        %980 = vmatprep.subr.bf16.mxu0 0
        %981 = vmatpush1.bf16.msra.mxu0 %v934
        %982 = vmatprep.subr.bf16.mxu0 0
        %983 = vmatpush1.bf16.msra.mxu0 %v935
        %984 = vmatprep.mubr.bf16.mxu0 %v816
        %985 = vmatmul.mubr.bf16.gmra.mrb[0].mxu0 %v815
        %v986 = vpop.f32.mrb[0].mxu0
        %v987 = vadd.f32 %v854, %v986
        %v988 = vpop.f32.mrb[0].mxu0
        %v989 = vpop.f32.mrb[0].mxu0
        %v990 = vpop.f32.mrb[0].mxu0
        %991 = vdwg.mxu0
        %992 = vst [vmem:[%s339] sm:$0xff] %v987
        %s993 = sand.u32 %s171, 1
        %s994 = scalar_lea.sflag [#allocation4], %s993
        %s995 = sand.u32 %s171, 1
        %s996 = smul.addr %s995, 8
        %s997 = scalar_lea.vmem [#allocation10], %s996
        // Predicated region
        $region61: #{tpu_custom_call.1} parent=43 // pred_check
          %p998 = pneg %p181
        $region62: #{tpu_custom_call.1} parent=43 // pred_check_branch
          %1000 = sbr.rel (%p998) target = $region64
        $region63: #{tpu_custom_call.1} parent=43 // pred_region
          %s1002 = ssub.s32 128, 128
          %1003 = vsyncadd %s994, %s1002
          %s1004 = smul.addr %s27, 128
          %s1005 = scalar_lea.hbm %s6, %s1004
          %s1007 = sshll.u32 %s997, 4
          %s1008 = int_to_ptr.vmem [resolvable:$true] %s1007
          %1010 = dma.vmem_to_hbm [thread:$0]  %s1008, 128, %s1005, %s994
        $region64: #{tpu_custom_call.1} parent=43 // pred_fallthru
          _
      $region44: #{tpu_custom_call.1} parent=5 // pred_fallthru
        _
      %p1011 = scmp.le.s32.totalorder 2, %s22
      // Predicated region
      $region65: #{tpu_custom_call.1} parent=5 // pred_check
        %p1012 = pneg %p1011
      $region66: #{tpu_custom_call.1} parent=5 // pred_check_branch
        %1014 = sbr.rel (%p1012) target = $region68
      $region67: #{tpu_custom_call.1} parent=5 // pred_region
        %s1015 = ssub.s32 %s22, 2
        // Predicated region
        $region69: #{tpu_custom_call.1} parent=67 // pred_check
          %p1016 = pneg %p187
        $region70: #{tpu_custom_call.1} parent=67 // pred_check_branch
          %1018 = sbr.rel (%p1016) target = $region72
        $region71: #{tpu_custom_call.1} parent=67 // pred_region
          %s1019 = sand.u32 %s172, 1
          %s1020 = scalar_lea.sflag [#allocation4], %s1019
          %s1021 = sand.u32 %s172, 1
          %s1022 = smul.addr %s1021, 8
          %s1023 = scalar_lea.vmem [#allocation10], %s1022
          %1024 = dma.done %s1020, 128
        $region72: #{tpu_custom_call.1} parent=67 // pred_fallthru
          _
      $region68: #{tpu_custom_call.1} parent=5 // pred_fallthru
        _
    $region6: #{tpu_custom_call.1} parent=1 // loop_footer
      %s26 = sadd.s32 1, %s22
    $region7: #{tpu_custom_call.1} parent=1 // loop_footer_branch
      %21 = sbr.rel target = $region3
    $region8: #{tpu_custom_call.1} parent=1 // loop_exit
      _
    %1025 = vsyncpa [#allocation3], 1
    %s1026 = scalar_lea.sflag [#allocation3], 1
    %1027 = vsyncpa %s1026, 1
    %1028 = vsyncpa [#allocation6], 1
    %s1029 = scalar_lea.sflag [#allocation6], 1
    %1030 = vsyncpa %s1029, 1
    %1031 = vsyncpa [#allocation9], 1
    %1032 = vsyncpa [#allocation4], 1
    %s1033 = scalar_lea.sflag [#allocation4], 1
    %1034 = vsyncpa %s1033, 1

</llo_original>
